<compile_context>
chip_gen: v6e
topology: v6e:2x2x1
jax: 0.10.0
libtpu: 0.0.40
codegen_flags: <defaults>
</compile_context>

<pallas_src>
import functools

import jax
import jax.numpy as jnp
from jax.experimental import pallas as pl
from jax.experimental.pallas import tpu as pltpu

OUT_LANES = 128  # lane-dense packed output width (mu | std | value | zero pad)


def _softplus_torch(x):
    # F.softplus(x, beta=1, threshold=20): x if x > 20 else log(1 + exp(x))
    safe = jnp.minimum(x, 20.0)
    return jnp.where(x > 20.0, x, jnp.log1p(jnp.exp(safe)))


def actor_critic_kernel(
    x_ref,                     # [B, obs] f32 raw observations
    w1_ref, b1_ref, cs1_ref,   # fused first layer: [obs, 2H] f32, [1, 2H] f32, colsum(W1) [1, 2H] f32
    aw2_ref, ab2_ref,          # actor_l2:  [H, H] bf16, [1, H] f32
    cw2_ref, cb2_ref,          # critic_l2: [H, H] bf16, [1, H] f32
    wh_ref, bh_ref,            # fused block-diag head: [2H, OUT_LANES] bf16, [1, OUT_LANES] f32
    out_ref,                   # [B, OUT_LANES] f32 packed: mu | std | value | zeros
    *, max_action, action_dim,
):
    A = action_dim
    H = aw2_ref.shape[0]

    x = x_ref[...].astype(jnp.float32)
    n = x.shape[0] * x.shape[1]

    # First-layer matmul on raw x (MXU) overlaps with the z-score reductions (XLU).
    y = jnp.dot(x, w1_ref[...], preferred_element_type=jnp.float32)        # [B, 2H]

    s = jnp.sum(x)
    ss = jnp.sum(x * x)
    mean = s / n
    # Bessel-corrected variance (torch .std()), clamped against cancellation going negative.
    var = jnp.maximum((ss - s * s / n) / max(n - 1, 1), 0.0)
    inv = 1.0 / (jnp.sqrt(var) + 1e-8)

    # Folded normalization: relu(((x-mean)*inv) @ W1 + b1) == relu(inv*y + (b1 - inv*mean*colsum(W1)))
    h1 = jnp.maximum(y * inv + (b1_ref[...] - (inv * mean) * cs1_ref[...]), 0.0)
    ha = h1[:, :H]     # actor branch  (tile-aligned split at H=256)
    hc = h1[:, H:]     # critic branch

    # Second layers: bf16 x bf16 -> f32 accumulate on the MXU.
    ha = jnp.maximum(
        jnp.dot(ha.astype(jnp.bfloat16), aw2_ref[...],
                preferred_element_type=jnp.float32) + ab2_ref[...], 0.0)
    hc = jnp.maximum(
        jnp.dot(hc.astype(jnp.bfloat16), cw2_ref[...],
                preferred_element_type=jnp.float32) + cb2_ref[...], 0.0)

    # Fused block-diagonal head: mu | std | value in ONE matmul, already lane-dense [B, 128].
    h_cat = jnp.concatenate([ha.astype(jnp.bfloat16), hc.astype(jnp.bfloat16)], axis=1)  # [B, 2H]
    head = jnp.dot(h_cat, wh_ref[...], preferred_element_type=jnp.float32) + bh_ref[...]  # [B, 128]

    lane = jax.lax.broadcasted_iota(jnp.int32, head.shape, 1)
    result = jnp.where(
        lane < A, jnp.tanh(head) * max_action,                       # mu lanes
        jnp.where(lane < 2 * A, _softplus_torch(head), head))        # std lanes | value/zero lanes

    # Single unmasked lane-dense store.
    out_ref[...] = result


def init_linear(key, in_dim, out_dim):
    """PyTorch nn.Linear default init: U(-1/sqrt(in), 1/sqrt(in)) for W and b.
    Returned W is [in_dim, out_dim] (already transposed for x @ W)."""
    kw, kb = jax.random.split(key)
    bound = 1.0 / jnp.sqrt(jnp.float32(in_dim))
    w = jax.random.uniform(kw, (in_dim, out_dim), jnp.float32, -bound, bound)
    b = jax.random.uniform(kb, (1, out_dim), jnp.float32, -bound, bound)
    return w, b


def pack_params(params, action_dim):
    """Build the fused / dtype-converted kernel-layout parameters (done once)."""
    A = action_dim
    H = params["aw2"].shape[0]

    w1 = jnp.concatenate([params["aw1"], params["cw1"]], axis=1)   # [obs, 2H] f32
    b1 = jnp.concatenate([params["ab1"], params["cb1"]], axis=1)   # [1, 2H]
    cs1 = jnp.sum(w1, axis=0, keepdims=True)                       # colsum(W1) [1, 2H]

    # Block-diagonal fused head: rows 0:H carry actor mu/std weights, rows H:2H the value head.
    w_head = jnp.zeros((2 * H, OUT_LANES), jnp.float32)
    w_head = w_head.at[:H, :A].set(params["awmu"])
    w_head = w_head.at[:H, A:2 * A].set(params["awstd"])
    w_head = w_head.at[H:, 2 * A:2 * A + 1].set(params["cwq"])
    b_head = jnp.zeros((1, OUT_LANES), jnp.float32)
    b_head = b_head.at[:, :A].set(params["abmu"])
    b_head = b_head.at[:, A:2 * A].set(params["abstd"])
    b_head = b_head.at[:, 2 * A:2 * A + 1].set(params["cbq"])

    return dict(
        w1=w1, b1=b1, cs1=cs1,
        aw2=params["aw2"].astype(jnp.bfloat16), ab2=params["ab2"],
        cw2=params["cw2"].astype(jnp.bfloat16), cb2=params["cb2"],
        w_head=w_head.astype(jnp.bfloat16), b_head=b_head,
    )


def actor_critic_forward(x, kparams, max_action, action_dim):
    B, obs_dim = x.shape
    H = kparams["aw2"].shape[0]
    A = action_dim

    inputs = (
        x,
        kparams["w1"], kparams["b1"], kparams["cs1"],
        kparams["aw2"], kparams["ab2"],
        kparams["cw2"], kparams["cb2"],
        kparams["w_head"], kparams["b_head"],
    )

    vmem_spec = pl.BlockSpec(memory_space=pltpu.MemorySpace.VMEM)

    flops = 2 * B * (obs_dim * 2 * H + 2 * H * H + 2 * H * OUT_LANES)
    transcendentals = 2 * B * OUT_LANES  # tanh + exp over the packed head
    bytes_accessed = sum(int(a.size) * a.dtype.itemsize for a in inputs)
    bytes_accessed += B * OUT_LANES * 4

    out = pl.pallas_call(
        functools.partial(actor_critic_kernel,
                          max_action=max_action, action_dim=A),
        out_shape=jax.ShapeDtypeStruct((B, OUT_LANES), jnp.float32),
        in_specs=[vmem_spec] * len(inputs),
        out_specs=vmem_spec,
        cost_estimate=pl.CostEstimate(flops=flops,
                                      transcendentals=transcendentals,
                                      bytes_accessed=bytes_accessed),
    )(*inputs)

    mu = out[:, :A]
    std = out[:, A:2 * A]
    values = out[:, 2 * A:2 * A + 1]
    return mu, std, values


def reference_forward(x, params, max_action):
    """Pure-JAX reference of forward_actor + forward_critic (f32 weights)."""
    n = x.size
    mean = jnp.mean(x)
    xc = x - mean
    std_n = jnp.sqrt(jnp.sum(xc * xc) / (n - 1))
    xn = xc / (std_n + 1e-8)

    h = jax.nn.relu(xn @ params["aw1"] + params["ab1"])
    h = jax.nn.relu(h @ params["aw2"] + params["ab2"])
    mu = jnp.tanh(h @ params["awmu"] + params["abmu"]) * max_action
    pre = h @ params["awstd"] + params["abstd"]
    std = jnp.where(pre > 20.0, pre, jnp.log1p(jnp.exp(jnp.minimum(pre, 20.0))))

    hc = jax.nn.relu(xn @ params["cw1"] + params["cb1"])
    hc = jax.nn.relu(hc @ params["cw2"] + params["cb2"])
    val = hc @ params["cwq"] + params["cbq"]
    return mu, std, val


if __name__ == "__main__":
    obs_dim, action_dim, hidden = 32, 4, 256
    batch = 8
    max_action = 3.0

    root = jax.random.PRNGKey(0)
    keys = jax.random.split(root, 8)

    aw1, ab1 = init_linear(keys[0], obs_dim, hidden)
    aw2, ab2 = init_linear(keys[1], hidden, hidden)
    awmu, abmu = init_linear(keys[2], hidden, action_dim)
    awstd, abstd = init_linear(keys[3], hidden, action_dim)
    cw1, cb1 = init_linear(keys[4], obs_dim, hidden)
    cw2, cb2 = init_linear(keys[5], hidden, hidden)
    cwq, cbq = init_linear(keys[6], hidden, 1)

    params = dict(
        aw1=aw1, ab1=ab1, aw2=aw2, ab2=ab2,
        awmu=awmu, abmu=abmu, awstd=awstd, abstd=abstd,
        cw1=cw1, cb1=cb1, cw2=cw2, cb2=cb2,
        cwq=cwq, cbq=cbq,
    )
    kparams = pack_params(params, action_dim)

    x = jax.random.normal(keys[7], (batch, obs_dim), jnp.float32)

    mu, std, values = actor_critic_forward(x, kparams, max_action, action_dim)
    jax.block_until_ready((mu, std, values))

    mu_ref, std_ref, val_ref = reference_forward(x, params, max_action)
    # bf16 storage of the hidden / head weights -> tolerance relaxed to 1e-2.
    assert jnp.allclose(mu, mu_ref, atol=1e-2, rtol=1e-2)
    assert jnp.allclose(std, std_ref, atol=1e-2, rtol=1e-2)
    assert jnp.allclose(values, val_ref, atol=1e-2, rtol=1e-2)

    print("KERNEL_OK")
</pallas_src>

<mosaic_0001>
module attributes {stable_mosaic.version = 11 : i64} {
  func.func @actor_critic_kernel(%arg0: memref<8x32xf32, #tpu.memory_space<vmem>>, %arg1: memref<32x512xf32, #tpu.memory_space<vmem>>, %arg2: memref<1x512xf32, #tpu.memory_space<vmem>>, %arg3: memref<1x512xf32, #tpu.memory_space<vmem>>, %arg4: memref<256x256xbf16, #tpu.memory_space<vmem>>, %arg5: memref<1x256xf32, #tpu.memory_space<vmem>>, %arg6: memref<256x256xbf16, #tpu.memory_space<vmem>>, %arg7: memref<1x256xf32, #tpu.memory_space<vmem>>, %arg8: memref<512x128xbf16, #tpu.memory_space<vmem>>, %arg9: memref<1x128xf32, #tpu.memory_space<vmem>>, %arg10: memref<8x128xf32, #tpu.memory_space<vmem>>) attributes {dimension_semantics = [], scalar_prefetch = 0 : i64, scratch_operands = 0 : i64, tpu.core_type = #tpu.core_type<tc>} {
    %c0 = arith.constant 0 : index
    %c0_0 = arith.constant 0 : index
    %0 = vector.load %arg0[%c0, %c0_0] : memref<8x32xf32, #tpu.memory_space<vmem>>, vector<8x32xf32>
    %c0_1 = arith.constant 0 : index
    %c0_2 = arith.constant 0 : index
    %1 = vector.load %arg1[%c0_1, %c0_2] : memref<32x512xf32, #tpu.memory_space<vmem>>, vector<32x512xf32>
    %cst = arith.constant dense<0.000000e+00> : vector<8x512xf32>
    %2 = tpu.matmul %0, %1, %cst {dimension_numbers = #tpu.dot_dimension_numbers<[1], [0], [0], [1], [0, 0, 1, 1], [], []>} : vector<8x32xf32>, vector<32x512xf32>, vector<8x512xf32> -> vector<8x512xf32>
    %3 = vector.shape_cast %0 : vector<8x32xf32> to vector<1x8x32xf32>
    %cst_3 = arith.constant dense<0.000000e+00> : vector<1xf32>
    %4 = vector.multi_reduction <add>, %3, %cst_3 [1, 2] : vector<1x8x32xf32> to vector<1xf32>
    %5 = vector.shape_cast %4 : vector<1xf32> to vector<1x1x1xf32>
    %6 = vector.extract %5[0, 0, 0] : f32 from vector<1x1x1xf32>
    %7 = arith.mulf %0, %0 : vector<8x32xf32>
    %8 = vector.shape_cast %7 : vector<8x32xf32> to vector<1x8x32xf32>
    %cst_4 = arith.constant dense<0.000000e+00> : vector<1xf32>
    %9 = vector.multi_reduction <add>, %8, %cst_4 [1, 2] : vector<1x8x32xf32> to vector<1xf32>
    %10 = vector.shape_cast %9 : vector<1xf32> to vector<1x1x1xf32>
    %11 = vector.extract %10[0, 0, 0] : f32 from vector<1x1x1xf32>
    %cst_5 = arith.constant 2.560000e+02 : f32
    %12 = arith.divf %6, %cst_5 : f32
    %13 = arith.mulf %6, %6 : f32
    %cst_6 = arith.constant 2.560000e+02 : f32
    %14 = arith.divf %13, %cst_6 : f32
    %15 = arith.subf %11, %14 : f32
    %cst_7 = arith.constant 2.550000e+02 : f32
    %16 = arith.divf %15, %cst_7 : f32
    %cst_8 = arith.constant 0.000000e+00 : f32
    %17 = arith.maximumf %16, %cst_8 : f32
    %18 = math.sqrt %17 : f32
    %cst_9 = arith.constant 9.99999993E-9 : f32
    %19 = arith.addf %18, %cst_9 : f32
    %cst_10 = arith.constant 1.000000e+00 : f32
    %20 = arith.divf %cst_10, %19 : f32
    %21 = vector.broadcast %20 : f32 to vector<8x512xf32>
    %22 = arith.mulf %2, %21 : vector<8x512xf32>
    %c0_11 = arith.constant 0 : index
    %c0_12 = arith.constant 0 : index
    %23 = vector.load %arg2[%c0_11, %c0_12] : memref<1x512xf32, #tpu.memory_space<vmem>>, vector<1x512xf32>
    %24 = arith.mulf %20, %12 : f32
    %c0_13 = arith.constant 0 : index
    %c0_14 = arith.constant 0 : index
    %25 = vector.load %arg3[%c0_13, %c0_14] : memref<1x512xf32, #tpu.memory_space<vmem>>, vector<1x512xf32>
    %26 = vector.broadcast %24 : f32 to vector<1x512xf32>
    %27 = arith.mulf %26, %25 : vector<1x512xf32>
    %28 = arith.subf %23, %27 : vector<1x512xf32>
    %29 = vector.broadcast %28 : vector<1x512xf32> to vector<8x512xf32>
    %30 = arith.addf %22, %29 : vector<8x512xf32>
    %cst_15 = arith.constant 0.000000e+00 : f32
    %31 = vector.broadcast %cst_15 : f32 to vector<8x512xf32>
    %32 = arith.maximumf %30, %31 : vector<8x512xf32>
    %33 = vector.extract_strided_slice %32 {offsets = [0, 0], sizes = [8, 256], strides = [1, 1]} : vector<8x512xf32> to vector<8x256xf32>
    %34 = vector.extract_strided_slice %32 {offsets = [0, 256], sizes = [8, 256], strides = [1, 1]} : vector<8x512xf32> to vector<8x256xf32>
    %35 = arith.truncf %33 : vector<8x256xf32> to vector<8x256xbf16>
    %c0_16 = arith.constant 0 : index
    %c0_17 = arith.constant 0 : index
    %36 = vector.load %arg4[%c0_16, %c0_17] : memref<256x256xbf16, #tpu.memory_space<vmem>>, vector<256x256xbf16>
    %cst_18 = arith.constant dense<0.000000e+00> : vector<8x256xf32>
    %37 = tpu.matmul %35, %36, %cst_18 {dimension_numbers = #tpu.dot_dimension_numbers<[1], [0], [0], [1], [0, 0, 1, 1], [], []>} : vector<8x256xbf16>, vector<256x256xbf16>, vector<8x256xf32> -> vector<8x256xf32>
    %c0_19 = arith.constant 0 : index
    %c0_20 = arith.constant 0 : index
    %38 = vector.load %arg5[%c0_19, %c0_20] : memref<1x256xf32, #tpu.memory_space<vmem>>, vector<1x256xf32>
    %39 = vector.broadcast %38 : vector<1x256xf32> to vector<8x256xf32>
    %40 = arith.addf %37, %39 : vector<8x256xf32>
    %cst_21 = arith.constant 0.000000e+00 : f32
    %41 = vector.broadcast %cst_21 : f32 to vector<8x256xf32>
    %42 = arith.maximumf %40, %41 : vector<8x256xf32>
    %43 = arith.truncf %34 : vector<8x256xf32> to vector<8x256xbf16>
    %c0_22 = arith.constant 0 : index
    %c0_23 = arith.constant 0 : index
    %44 = vector.load %arg6[%c0_22, %c0_23] : memref<256x256xbf16, #tpu.memory_space<vmem>>, vector<256x256xbf16>
    %cst_24 = arith.constant dense<0.000000e+00> : vector<8x256xf32>
    %45 = tpu.matmul %43, %44, %cst_24 {dimension_numbers = #tpu.dot_dimension_numbers<[1], [0], [0], [1], [0, 0, 1, 1], [], []>} : vector<8x256xbf16>, vector<256x256xbf16>, vector<8x256xf32> -> vector<8x256xf32>
    %c0_25 = arith.constant 0 : index
    %c0_26 = arith.constant 0 : index
    %46 = vector.load %arg7[%c0_25, %c0_26] : memref<1x256xf32, #tpu.memory_space<vmem>>, vector<1x256xf32>
    %47 = vector.broadcast %46 : vector<1x256xf32> to vector<8x256xf32>
    %48 = arith.addf %45, %47 : vector<8x256xf32>
    %cst_27 = arith.constant 0.000000e+00 : f32
    %49 = vector.broadcast %cst_27 : f32 to vector<8x256xf32>
    %50 = arith.maximumf %48, %49 : vector<8x256xf32>
    %51 = arith.truncf %42 : vector<8x256xf32> to vector<8x256xbf16>
    %52 = arith.truncf %50 : vector<8x256xf32> to vector<8x256xbf16>
    %53 = tpu.concatenate %51, %52 in 1 : vector<8x256xbf16>, vector<8x256xbf16> -> vector<8x512xbf16>
    %c0_28 = arith.constant 0 : index
    %c0_29 = arith.constant 0 : index
    %54 = vector.load %arg8[%c0_28, %c0_29] : memref<512x128xbf16, #tpu.memory_space<vmem>>, vector<512x128xbf16>
    %cst_30 = arith.constant dense<0.000000e+00> : vector<8x128xf32>
    %55 = tpu.matmul %53, %54, %cst_30 {dimension_numbers = #tpu.dot_dimension_numbers<[1], [0], [0], [1], [0, 0, 1, 1], [], []>} : vector<8x512xbf16>, vector<512x128xbf16>, vector<8x128xf32> -> vector<8x128xf32>
    %c0_31 = arith.constant 0 : index
    %c0_32 = arith.constant 0 : index
    %56 = vector.load %arg9[%c0_31, %c0_32] : memref<1x128xf32, #tpu.memory_space<vmem>>, vector<1x128xf32>
    %57 = vector.broadcast %56 : vector<1x128xf32> to vector<8x128xf32>
    %58 = arith.addf %55, %57 : vector<8x128xf32>
    %59 = tpu.iota {dimensions = array<i32: 1>} : vector<8x128xi32>
    %c4_i32 = arith.constant 4 : i32
    %60 = vector.broadcast %c4_i32 : i32 to vector<8x128xi32>
    %61 = arith.cmpi slt, %59, %60 : vector<8x128xi32>
    %62 = math.tanh %58 : vector<8x128xf32>
    %cst_33 = arith.constant 3.000000e+00 : f32
    %63 = vector.broadcast %cst_33 : f32 to vector<8x128xf32>
    %64 = arith.mulf %62, %63 : vector<8x128xf32>
    %c8_i32 = arith.constant 8 : i32
    %65 = vector.broadcast %c8_i32 : i32 to vector<8x128xi32>
    %66 = arith.cmpi slt, %59, %65 : vector<8x128xi32>
    %cst_34 = arith.constant 2.000000e+01 : f32
    %67 = vector.broadcast %cst_34 : f32 to vector<8x128xf32>
    %68 = arith.minimumf %58, %67 : vector<8x128xf32>
    %cst_35 = arith.constant 2.000000e+01 : f32
    %69 = vector.broadcast %cst_35 : f32 to vector<8x128xf32>
    %70 = arith.cmpf ogt, %58, %69 : vector<8x128xf32>
    %71 = math.exp %68 : vector<8x128xf32>
    %72 = math.log1p %71 : vector<8x128xf32>
    %73 = arith.select %70, %58, %72 : vector<8x128xi1>, vector<8x128xf32>
    %74 = arith.select %66, %73, %58 : vector<8x128xi1>, vector<8x128xf32>
    %75 = arith.select %61, %64, %74 : vector<8x128xi1>, vector<8x128xf32>
    %c0_36 = arith.constant 0 : index
    %c0_37 = arith.constant 0 : index
    %76 = vector.load %arg10[%c0_36, %c0_37] : memref<8x128xf32, #tpu.memory_space<vmem>>, vector<8x128xf32>
    tpu.vector_store %arg10[%c0_36, %c0_37], %75 {strides = array<i32>} : memref<8x128xf32, #tpu.memory_space<vmem>>, vector<8x128xf32>,
    return
  }
}

</mosaic_0001>

<llo_original>
// kernel: tpu_custom_call.1
$region0: #{tpu_custom_call.1}
  #allocation0 [shape = 'u32[]', space=smem, size = 0x4, offset = 0x4, fixed_abs, tag = 'smem constant byte address 0x4 - core index']
  #allocation1 [shape = 'u32[144,128]{1,0:T(1,128)}', space=vmem, size = 0x12000, scoped, tag = 'internal scratch']
  %s0 = inlined_call_operand.hbm [shape: f32[8,32], index: 0, kind: input, shape index: {}]
  %s1 = inlined_call_operand.hbm [shape: f32[32,512], index: 1, kind: input, shape index: {}]
  %s2 = inlined_call_operand.hbm [shape: f32[1,512], index: 2, kind: input, shape index: {}]
  %s3 = inlined_call_operand.vmem [shape: f32[1,512], index: 3, kind: input, shape index: {}]
  %s4 = inlined_call_operand.hbm [shape: bf16[256,256], index: 4, kind: input, shape index: {}]
  %s5 = inlined_call_operand.vmem [shape: f32[1,256], index: 5, kind: input, shape index: {}]
  %s6 = inlined_call_operand.hbm [shape: bf16[256,256], index: 6, kind: input, shape index: {}]
  %s7 = inlined_call_operand.vmem [shape: f32[1,256], index: 7, kind: input, shape index: {}]
  %s8 = inlined_call_operand.hbm [shape: bf16[512,128], index: 8, kind: input, shape index: {}]
  %s9 = inlined_call_operand.vmem [shape: f32[1,128], index: 9, kind: input, shape index: {}]
  %s10 = inlined_call_operand.hbm [shape: f32[8,128], index: 10, kind: output, shape index: {}]
  %s11 = sld [smem:[#allocation0]]
  $region74: #{tpu_custom_call.1} parent=0
    _
  %s13 = ssub.s32 1, %s11
  %s14 = scalar_select 0, %s13, %s11
  $region1: #{tpu_custom_call.1} parent=0
    #allocation2 [shape = 'u8[4096]{0}', space=vmem, size = 0x1000, scoped, tag = 'input window, operand 0, single buffered']
    #allocation3 [shape = 's32[1]{0}', space=sflag, size = 0x4, scoped, tag = 'scoped memory for tpu_custom_call.1']
    #allocation4 [shape = 's32[1]{0}', space=sflag, size = 0x4, scoped, tag = 'scoped memory for tpu_custom_call.1']
    #allocation5 [shape = 'u8[65536]{0}', space=vmem, size = 0x10000, scoped, tag = 'input window, operand 1, single buffered']
    #allocation6 [shape = 's32[1]{0}', space=sflag, size = 0x4, scoped, tag = 'scoped memory for tpu_custom_call.1']
    #allocation7 [shape = 'u8[2048]{0}', space=vmem, size = 0x800, scoped, tag = 'input window, operand 2, single buffered']
    #allocation8 [shape = 'u8[131072]{0}', space=vmem, size = 0x20000, scoped, tag = 'input window, operand 4, single buffered']
    #allocation9 [shape = 's32[1]{0}', space=sflag, size = 0x4, scoped, tag = 'scoped memory for tpu_custom_call.1']
    #allocation10 [shape = 'u8[131072]{0}', space=vmem, size = 0x20000, scoped, tag = 'input window, operand 6, single buffered']
    #allocation11 [shape = 'u8[131072]{0}', space=vmem, size = 0x20000, scoped, tag = 'input window, operand 8, single buffered']
    #allocation12 [shape = 's32[1]{0}', space=sflag, size = 0x4, scoped, tag = 'scoped memory for tpu_custom_call.1']
    #allocation13 [shape = 'u8[4096]{0}', space=vmem, size = 0x1000, scoped, tag = 'output window, operand 0, single buffered']
    %15 = vsyncpa [#allocation3], 0
    %16 = vsyncpa [#allocation6], 0
    %17 = vsyncpa [#allocation9], 0
    %18 = vsyncpa [#allocation12], 0
    %19 = vsyncpa [#allocation4], 0
    // Predicated region
    $region2: #{tpu_custom_call.1} parent=1 // pred_check
      _
    $region3: #{tpu_custom_call.1} parent=1 // pred_check_branch
      %21 = sbr.rel (0) target = $region5
    $region4: #{tpu_custom_call.1} parent=1 // pred_region
      %s23 = ssub.s32 128, 128
      %24 = vsyncadd [#allocation3], %s23
      %s26 = sshll.u32 [#allocation2], 4
      %s27 = int_to_ptr.vmem [resolvable:$true] %s26
      %29 = dma.hbm_to_vmem [thread:$0]  %s0, 128, %s27, [#allocation3]
    $region5: #{tpu_custom_call.1} parent=1 // pred_fallthru
      _
    // Predicated region
    $region6: #{tpu_custom_call.1} parent=1 // pred_check
      _
    $region7: #{tpu_custom_call.1} parent=1 // pred_check_branch
      %31 = sbr.rel (0) target = $region9
    $region8: #{tpu_custom_call.1} parent=1 // pred_region
      %s33 = ssub.s32 2048, 2048
      %34 = vsyncadd [#allocation6], %s33
      %s35 = sshll.u32 [#allocation5], 4
      %s36 = int_to_ptr.vmem [resolvable:$true] %s35
      %41 = dma.hbm_to_vmem [thread:$0]  %s1, 2048, %s36, [#allocation6], 512, 512, 32
    $region9: #{tpu_custom_call.1} parent=1 // pred_fallthru
      _
    // Predicated region
    $region10: #{tpu_custom_call.1} parent=1 // pred_check
      _
    $region11: #{tpu_custom_call.1} parent=1 // pred_check_branch
      %43 = sbr.rel (0) target = $region13
    $region12: #{tpu_custom_call.1} parent=1 // pred_region
      %s45 = ssub.s32 64, 64
      %46 = vsyncadd [#allocation6], %s45
      %s48 = sshll.u32 [#allocation7], 4
      %s49 = int_to_ptr.vmem [resolvable:$true] %s48
      %51 = dma.hbm_to_vmem [thread:$0]  %s2, 64, %s49, [#allocation6]
    $region13: #{tpu_custom_call.1} parent=1 // pred_fallthru
      _
    // Predicated region
    $region14: #{tpu_custom_call.1} parent=1 // pred_check
      _
    $region15: #{tpu_custom_call.1} parent=1 // pred_check_branch
      %53 = sbr.rel (0) target = $region17
    $region16: #{tpu_custom_call.1} parent=1 // pred_region
      _
    $region17: #{tpu_custom_call.1} parent=1 // pred_fallthru
      _
    // Predicated region
    $region18: #{tpu_custom_call.1} parent=1 // pred_check
      _
    $region19: #{tpu_custom_call.1} parent=1 // pred_check_branch
      %55 = sbr.rel (0) target = $region21
    $region20: #{tpu_custom_call.1} parent=1 // pred_region
      %s57 = ssub.s32 4096, 4096
      %58 = vsyncadd [#allocation9], %s57
      %s59 = sshll.u32 [#allocation8], 4
      %s60 = int_to_ptr.vmem [resolvable:$true] %s59
      %65 = dma.hbm_to_vmem [thread:$0]  %s4, 4096, %s60, [#allocation9], 128, 128, 8
    $region21: #{tpu_custom_call.1} parent=1 // pred_fallthru
      _
    // Predicated region
    $region22: #{tpu_custom_call.1} parent=1 // pred_check
      _
    $region23: #{tpu_custom_call.1} parent=1 // pred_check_branch
      %67 = sbr.rel (0) target = $region25
    $region24: #{tpu_custom_call.1} parent=1 // pred_region
      _
    $region25: #{tpu_custom_call.1} parent=1 // pred_fallthru
      _
    // Predicated region
    $region26: #{tpu_custom_call.1} parent=1 // pred_check
      _
    $region27: #{tpu_custom_call.1} parent=1 // pred_check_branch
      %69 = sbr.rel (0) target = $region29
    $region28: #{tpu_custom_call.1} parent=1 // pred_region
      %s71 = ssub.s32 4096, 4096
      %72 = vsyncadd [#allocation9], %s71
      %s73 = sshll.u32 [#allocation10], 4
      %s74 = int_to_ptr.vmem [resolvable:$true] %s73
      %79 = dma.hbm_to_vmem [thread:$0]  %s6, 4096, %s74, [#allocation9], 128, 128, 8
    $region29: #{tpu_custom_call.1} parent=1 // pred_fallthru
      _
    // Predicated region
    $region30: #{tpu_custom_call.1} parent=1 // pred_check
      _
    $region31: #{tpu_custom_call.1} parent=1 // pred_check_branch
      %81 = sbr.rel (0) target = $region33
    $region32: #{tpu_custom_call.1} parent=1 // pred_region
      _
    $region33: #{tpu_custom_call.1} parent=1 // pred_fallthru
      _
    // Predicated region
    $region34: #{tpu_custom_call.1} parent=1 // pred_check
      _
    $region35: #{tpu_custom_call.1} parent=1 // pred_check_branch
      %83 = sbr.rel (0) target = $region37
    $region36: #{tpu_custom_call.1} parent=1 // pred_region
      %s85 = ssub.s32 4096, 4096
      %86 = vsyncadd [#allocation12], %s85
      %s87 = sshll.u32 [#allocation11], 4
      %s88 = int_to_ptr.vmem [resolvable:$true] %s87
      %93 = dma.hbm_to_vmem [thread:$0]  %s8, 4096, %s88, [#allocation12], 64, 64, 4
    $region37: #{tpu_custom_call.1} parent=1 // pred_fallthru
      _
    // Predicated region
    $region38: #{tpu_custom_call.1} parent=1 // pred_check
      _
    $region39: #{tpu_custom_call.1} parent=1 // pred_check_branch
      %95 = sbr.rel (0) target = $region41
    $region40: #{tpu_custom_call.1} parent=1 // pred_region
      _
    $region41: #{tpu_custom_call.1} parent=1 // pred_fallthru
      _
    // Predicated region
    $region42: #{tpu_custom_call.1} parent=1 // pred_check
      _
    $region43: #{tpu_custom_call.1} parent=1 // pred_check_branch
      %97 = sbr.rel (0) target = $region45
    $region44: #{tpu_custom_call.1} parent=1 // pred_region
      %98 = dma.done [#allocation3], 128
    $region45: #{tpu_custom_call.1} parent=1 // pred_fallthru
      _
    // Predicated region
    $region46: #{tpu_custom_call.1} parent=1 // pred_check
      _
    $region47: #{tpu_custom_call.1} parent=1 // pred_check_branch
      %100 = sbr.rel (0) target = $region49
    $region48: #{tpu_custom_call.1} parent=1 // pred_region
      %101 = dma.done [#allocation6], 2048
    $region49: #{tpu_custom_call.1} parent=1 // pred_fallthru
      _
    // Predicated region
    $region50: #{tpu_custom_call.1} parent=1 // pred_check
      _
    $region51: #{tpu_custom_call.1} parent=1 // pred_check_branch
      %103 = sbr.rel (0) target = $region53
    $region52: #{tpu_custom_call.1} parent=1 // pred_region
      %104 = dma.done [#allocation6], 64
    $region53: #{tpu_custom_call.1} parent=1 // pred_fallthru
      _
    // Predicated region
    $region54: #{tpu_custom_call.1} parent=1 // pred_check
      _
    $region55: #{tpu_custom_call.1} parent=1 // pred_check_branch
      %106 = sbr.rel (0) target = $region57
    $region56: #{tpu_custom_call.1} parent=1 // pred_region
      %107 = dma.done [#allocation9], 4096
    $region57: #{tpu_custom_call.1} parent=1 // pred_fallthru
      _
    // Predicated region
    $region58: #{tpu_custom_call.1} parent=1 // pred_check
      _
    $region59: #{tpu_custom_call.1} parent=1 // pred_check_branch
      %109 = sbr.rel (0) target = $region61
    $region60: #{tpu_custom_call.1} parent=1 // pred_region
      %110 = dma.done [#allocation9], 4096
    $region61: #{tpu_custom_call.1} parent=1 // pred_fallthru
      _
    // Predicated region
    $region62: #{tpu_custom_call.1} parent=1 // pred_check
      _
    $region63: #{tpu_custom_call.1} parent=1 // pred_check_branch
      %112 = sbr.rel (0) target = $region65
    $region64: #{tpu_custom_call.1} parent=1 // pred_region
      %113 = dma.done [#allocation12], 4096
    $region65: #{tpu_custom_call.1} parent=1 // pred_fallthru
      _
    %v115 = vld [vmem:[#allocation2] sm:$0xff]
    %v116 = vld [vmem:[#allocation5] sm:$0xff]
    %v117 = vld [vmem:[#allocation5 + $0x8] sm:$0xff]
    %v118 = vld [vmem:[#allocation5 + $0x10] sm:$0xff]
    %v119 = vld [vmem:[#allocation5 + $0x18] sm:$0xff]
    %v120 = vld [vmem:[#allocation5 + $0x20] sm:$0xff]
    %v121 = vld [vmem:[#allocation5 + $0x28] sm:$0xff]
    %v122 = vld [vmem:[#allocation5 + $0x30] sm:$0xff]
    %v123 = vld [vmem:[#allocation5 + $0x38] sm:$0xff]
    %v124 = vld [vmem:[#allocation5 + $0x40] sm:$0xff]
    %v125 = vld [vmem:[#allocation5 + $0x48] sm:$0xff]
    %v126 = vld [vmem:[#allocation5 + $0x50] sm:$0xff]
    %v127 = vld [vmem:[#allocation5 + $0x58] sm:$0xff]
    %v128 = vld [vmem:[#allocation5 + $0x60] sm:$0xff]
    %v129 = vld [vmem:[#allocation5 + $0x68] sm:$0xff]
    %v130 = vld [vmem:[#allocation5 + $0x70] sm:$0xff]
    %v131 = vld [vmem:[#allocation5 + $0x78] sm:$0xff]
    %vm132 = vcmask 261120
    %v134 = vsel %vm132, %v115, 0
    %136 = vmatprep.subr.mxu0 0.0
    %137 = vmatpush1.msra.mxu0 0.0
    %138 = vmatprep.subr.mxu0 0.0
    %139 = vmatpush1.msra.mxu0 0.0
    %140 = vmatprep.subr.mxu0 0.0
    %141 = vmatpush1.msra.mxu0 0.0
    %142 = vmatprep.subr.mxu0 0.0
    %143 = vmatpush1.msra.mxu0 0.0
    %144 = vmatprep.subr.mxu0 0.0
    %145 = vmatpush1.msra.mxu0 0.0
    %146 = vmatprep.subr.mxu0 0.0
    %147 = vmatpush1.msra.mxu0 0.0
    %148 = vmatprep.subr.mxu0 0.0
    %149 = vmatpush1.msra.mxu0 0.0
    %150 = vmatprep.subr.mxu0 0.0
    %151 = vmatpush1.msra.mxu0 0.0
    %152 = vmatprep.subr.mxu0 0.0
    %153 = vmatpush1.msra.mxu0 0.0
    %154 = vmatprep.subr.mxu0 0.0
    %155 = vmatpush1.msra.mxu0 0.0
    %156 = vmatprep.subr.mxu0 0.0
    %157 = vmatpush1.msra.mxu0 0.0
    %158 = vmatprep.subr.mxu0 0.0
    %159 = vmatpush1.msra.mxu0 0.0
    %160 = vmatprep.subr.mxu0 %v129
    %161 = vmatpush1.msra.mxu0 %v128
    %162 = vmatprep.subr.mxu0 %v125
    %163 = vmatpush1.msra.mxu0 %v124
    %164 = vmatprep.subr.mxu0 %v121
    %165 = vmatpush1.msra.mxu0 %v120
    %166 = vmatprep.subr.mxu0 %v117
    %167 = vmatpush1.msra.mxu0 %v116
    %168 = vmatprep.subr.mxu0 0.0
    %169 = vmatpush2.msra.mxu0 0.0
    %170 = vmatprep.subr.mxu0 0.0
    %171 = vmatpush2.msra.mxu0 0.0
    %172 = vmatprep.subr.mxu0 0.0
    %173 = vmatpush2.msra.mxu0 0.0
    %174 = vmatprep.subr.mxu0 0.0
    %175 = vmatpush2.msra.mxu0 0.0
    %176 = vmatprep.subr.mxu0 0.0
    %177 = vmatpush2.msra.mxu0 0.0
    %178 = vmatprep.subr.mxu0 0.0
    %179 = vmatpush2.msra.mxu0 0.0
    %180 = vmatprep.subr.mxu0 0.0
    %181 = vmatpush2.msra.mxu0 0.0
    %182 = vmatprep.subr.mxu0 0.0
    %183 = vmatpush2.msra.mxu0 0.0
    %184 = vmatprep.subr.mxu0 0.0
    %185 = vmatpush2.msra.mxu0 0.0
    %186 = vmatprep.subr.mxu0 0.0
    %187 = vmatpush2.msra.mxu0 0.0
    %188 = vmatprep.subr.mxu0 0.0
    %189 = vmatpush2.msra.mxu0 0.0
    %190 = vmatprep.subr.mxu0 0.0
    %191 = vmatpush2.msra.mxu0 0.0
    %192 = vmatprep.subr.mxu0 0.0
    %193 = vmatpush2.msra.mxu0 0.0
    %194 = vmatprep.subr.mxu0 0.0
    %195 = vmatpush2.msra.mxu0 0.0
    %196 = vmatprep.subr.mxu0 0.0
    %197 = vmatpush2.msra.mxu0 0.0
    %198 = vmatprep.subr.mxu0 0.0
    %199 = vmatpush2.msra.mxu0 0.0
    %200 = vmatprep.mubr.f32.mxu0 0.0
    %201 = vmatmul.mubr.f32.gmra.mxu0 %v134
    %v202 = vpop.f32.mrf.mxu0
    %v203 = vadd.f32 0.0, %v202
    %v204 = vpop.f32.mrf.mxu0
    %v205 = vadd.f32 0.0, %v204
    %206 = vdwg.mxu0
    %207 = vmatprep.subr.mxu0 0.0
    %208 = vmatpush1.msra.mxu0 0.0
    %209 = vmatprep.subr.mxu0 0.0
    %210 = vmatpush1.msra.mxu0 0.0
    %211 = vmatprep.subr.mxu0 0.0
    %212 = vmatpush1.msra.mxu0 0.0
    %213 = vmatprep.subr.mxu0 0.0
    %214 = vmatpush1.msra.mxu0 0.0
    %215 = vmatprep.subr.mxu0 0.0
    %216 = vmatpush1.msra.mxu0 0.0
    %217 = vmatprep.subr.mxu0 0.0
    %218 = vmatpush1.msra.mxu0 0.0
    %219 = vmatprep.subr.mxu0 0.0
    %220 = vmatpush1.msra.mxu0 0.0
    %221 = vmatprep.subr.mxu0 0.0
    %222 = vmatpush1.msra.mxu0 0.0
    %223 = vmatprep.subr.mxu0 0.0
    %224 = vmatpush1.msra.mxu0 0.0
    %225 = vmatprep.subr.mxu0 0.0
    %226 = vmatpush1.msra.mxu0 0.0
    %227 = vmatprep.subr.mxu0 0.0
    %228 = vmatpush1.msra.mxu0 0.0
    %229 = vmatprep.subr.mxu0 0.0
    %230 = vmatpush1.msra.mxu0 0.0
    %231 = vmatprep.subr.mxu0 %v131
    %232 = vmatpush1.msra.mxu0 %v130
    %233 = vmatprep.subr.mxu0 %v127
    %234 = vmatpush1.msra.mxu0 %v126
    %235 = vmatprep.subr.mxu0 %v123
    %236 = vmatpush1.msra.mxu0 %v122
    %237 = vmatprep.subr.mxu0 %v119
    %238 = vmatpush1.msra.mxu0 %v118
    %239 = vmatprep.subr.mxu0 0.0
    %240 = vmatpush2.msra.mxu0 0.0
    %241 = vmatprep.subr.mxu0 0.0
    %242 = vmatpush2.msra.mxu0 0.0
    %243 = vmatprep.subr.mxu0 0.0
    %244 = vmatpush2.msra.mxu0 0.0
    %245 = vmatprep.subr.mxu0 0.0
    %246 = vmatpush2.msra.mxu0 0.0
    %247 = vmatprep.subr.mxu0 0.0
    %248 = vmatpush2.msra.mxu0 0.0
    %249 = vmatprep.subr.mxu0 0.0
    %250 = vmatpush2.msra.mxu0 0.0
    %251 = vmatprep.subr.mxu0 0.0
    %252 = vmatpush2.msra.mxu0 0.0
    %253 = vmatprep.subr.mxu0 0.0
    %254 = vmatpush2.msra.mxu0 0.0
    %255 = vmatprep.subr.mxu0 0.0
    %256 = vmatpush2.msra.mxu0 0.0
    %257 = vmatprep.subr.mxu0 0.0
    %258 = vmatpush2.msra.mxu0 0.0
    %259 = vmatprep.subr.mxu0 0.0
    %260 = vmatpush2.msra.mxu0 0.0
    %261 = vmatprep.subr.mxu0 0.0
    %262 = vmatpush2.msra.mxu0 0.0
    %263 = vmatprep.subr.mxu0 0.0
    %264 = vmatpush2.msra.mxu0 0.0
    %265 = vmatprep.subr.mxu0 0.0
    %266 = vmatpush2.msra.mxu0 0.0
    %267 = vmatprep.subr.mxu0 0.0
    %268 = vmatpush2.msra.mxu0 0.0
    %269 = vmatprep.subr.mxu0 0.0
    %270 = vmatpush2.msra.mxu0 0.0
    %271 = vmatprep.mubr.f32.mxu0 0.0
    %272 = vmatmul.mubr.f32.gmra.mxu0 %v134
    %v273 = vpop.f32.mrf.mxu0
    %v274 = vadd.f32 0.0, %v273
    %v275 = vpop.f32.mrf.mxu0
    %v276 = vadd.f32 0.0, %v275
    %277 = vdwg.mxu0
    %v278 = vsel %vm132, %v115, 0.0
    %279 = vadd.xlane.f32.xlu0 %v278
    %v280 = vpop.xlane.xlu0 %279
    %v281 = vrot.slane %v280, 4
    %v282 = vadd.f32 %v280, %v281
    %v283 = vrot.slane %v282, 2
    %v284 = vadd.f32 %v282, %v283
    %v285 = vrot.slane %v284, 1
    %v286 = vadd.f32 %v284, %v285
    %s287 = vtos %v286
    %v288 = vmul.f32 %v115, %v115
    %v289 = vsel %vm132, %v288, 0.0
    %290 = vadd.xlane.f32.xlu0 %v289
    %v291 = vpop.xlane.xlu0 %290
    %v292 = vrot.slane %v291, 4
    %v293 = vadd.f32 %v291, %v292
    %v294 = vrot.slane %v293, 2
    %v295 = vadd.f32 %v293, %v294
    %v296 = vrot.slane %v295, 1
    %v297 = vadd.f32 %v295, %v296
    %s298 = vtos %v297
    %v299 = vrcp.pop 256.0
    %s300 = vtos %v299
    %s301 = smul.f32 %s287, %s300
    %s302 = smul.f32 %s287, %s287
    %v303 = vrcp.pop 256.0
    %s304 = vtos %v303
    %s305 = smul.f32 %s302, %s304
    %s306 = ssub.f32 %s298, %s305
    %v307 = vrcp.pop 255.0
    %s308 = vtos %v307
    %s309 = smul.f32 %s306, %s308
    %s310 = smax.f32 %s309, 0.0
    %v311 = vstv %s310
    %v312 = vrsqrt.pop %v311
    %v313 = vmul.f32 %v311, %v312
    %vm314 = vcmp.eq.f32.partialorder %v311, inf
    %v315 = vsel %vm314, %v311, %v313
    %vm316 = vcmp.eq.f32.partialorder %v311, 0.0
    %v317 = vand.u32 %v311, 2147483648
    %v318 = vsel %vm316, %v317, %v315
    %s319 = vtos %v318
    %s320 = sadd.f32 %s319, 1e-08
    %v321 = vstv %s320
    %v322 = vrcp.pop %v321
    %s323 = vtos %v322
    %v324 = vstv %s323
    %v325 = vmul.f32 %v203, %v324
    %v326 = vmul.f32 %v205, %v324
    %v327 = vmul.f32 %v274, %v324
    %v328 = vmul.f32 %v276, %v324
    %v329 = vld [vmem:[#allocation7] sm:$0xf]
    %s330 = smul.f32 %s323, %s301
    %v331 = vld [vmem:[%s3] sm:$0xf]
    %v332 = vstv %s330
    %v333 = vmul.f32 %v332, %v331
    %v334 = vsub.f32 %v329, %v333
    %v336 = vlaneseq
    %v337 = vshrl.u32 %v336, 7
    %v338 = vsub.s32 0, %v337
    %v339 = vrot.slane %v334, %v338
    %v340 = vlaneseq
    %v341 = vshrl.u32 %v340, 7
    %v342 = vsub.s32 1, %v341
    %v343 = vrot.slane %v334, %v342
    %v344 = vlaneseq
    %v345 = vshrl.u32 %v344, 7
    %v346 = vsub.s32 2, %v345
    %v347 = vrot.slane %v334, %v346
    %v348 = vlaneseq
    %v349 = vshrl.u32 %v348, 7
    %v350 = vsub.s32 3, %v349
    %v351 = vrot.slane %v334, %v350
    %v356 = vadd.f32 %v325, %v339
    %v357 = vadd.f32 %v326, %v343
    %v358 = vadd.f32 %v327, %v347
    %v359 = vadd.f32 %v328, %v351
    %v360 = vmax.f32 %v356, 0.0
    %v361 = vmax.f32 %v357, 0.0
    %v362 = vmax.f32 %v358, 0.0
    %v363 = vmax.f32 %v359, 0.0
    %v364 = vpack.c.bf16 %v360, %v360
    %v365 = vpack.c.bf16 %v361, %v361
    %v366 = vld [vmem:[#allocation8] sm:$0xff]
    %v367 = vld [vmem:[#allocation8 + $0x8] sm:$0xff]
    %v368 = vld [vmem:[#allocation8 + $0x10] sm:$0xff]
    %v369 = vld [vmem:[#allocation8 + $0x18] sm:$0xff]
    %v370 = vld [vmem:[#allocation8 + $0x20] sm:$0xff]
    %v371 = vld [vmem:[#allocation8 + $0x28] sm:$0xff]
    %v372 = vld [vmem:[#allocation8 + $0x30] sm:$0xff]
    %v373 = vld [vmem:[#allocation8 + $0x38] sm:$0xff]
    %v374 = vld [vmem:[#allocation8 + $0x40] sm:$0xff]
    %v375 = vld [vmem:[#allocation8 + $0x48] sm:$0xff]
    %v376 = vld [vmem:[#allocation8 + $0x50] sm:$0xff]
    %v377 = vld [vmem:[#allocation8 + $0x58] sm:$0xff]
    %v378 = vld [vmem:[#allocation8 + $0x60] sm:$0xff]
    %v379 = vld [vmem:[#allocation8 + $0x68] sm:$0xff]
    %v380 = vld [vmem:[#allocation8 + $0x70] sm:$0xff]
    %v381 = vld [vmem:[#allocation8 + $0x78] sm:$0xff]
    %v382 = vld [vmem:[#allocation8 + $0x80] sm:$0xff]
    %v383 = vld [vmem:[#allocation8 + $0x88] sm:$0xff]
    %v384 = vld [vmem:[#allocation8 + $0x90] sm:$0xff]
    %v385 = vld [vmem:[#allocation8 + $0x98] sm:$0xff]
    %v386 = vld [vmem:[#allocation8 + $0xa0] sm:$0xff]
    %v387 = vld [vmem:[#allocation8 + $0xa8] sm:$0xff]
    %v388 = vld [vmem:[#allocation8 + $0xb0] sm:$0xff]
    %v389 = vld [vmem:[#allocation8 + $0xb8] sm:$0xff]
    %v390 = vld [vmem:[#allocation8 + $0xc0] sm:$0xff]
    %v391 = vld [vmem:[#allocation8 + $0xc8] sm:$0xff]
    %v392 = vld [vmem:[#allocation8 + $0xd0] sm:$0xff]
    %v393 = vld [vmem:[#allocation8 + $0xd8] sm:$0xff]
    %v394 = vld [vmem:[#allocation8 + $0xe0] sm:$0xff]
    %v395 = vld [vmem:[#allocation8 + $0xe8] sm:$0xff]
    %v396 = vld [vmem:[#allocation8 + $0xf0] sm:$0xff]
    %v397 = vld [vmem:[#allocation8 + $0xf8] sm:$0xff]
    %v398 = vld [vmem:[%s5] sm:$0x3]
    %v400 = vlaneseq
    %v401 = vshrl.u32 %v400, 7
    %v402 = vsub.s32 0, %v401
    %v403 = vrot.slane %v398, %v402
    %v404 = vlaneseq
    %v405 = vshrl.u32 %v404, 7
    %v406 = vsub.s32 1, %v405
    %v407 = vrot.slane %v398, %v406
    %v442 = vunpack.c.l.b16 %v366
    %v443 = vunpack.c.h.b16 %v366
    %v444 = vunpack.c.l.b16 %v367
    %v445 = vunpack.c.h.b16 %v367
    %v446 = vunpack.c.l.b16 %v368
    %v447 = vunpack.c.h.b16 %v368
    %v448 = vunpack.c.l.b16 %v369
    %v449 = vunpack.c.h.b16 %v369
    %v450 = vunpack.c.l.b16 %v370
    %v451 = vunpack.c.h.b16 %v370
    %v452 = vunpack.c.l.b16 %v371
    %v453 = vunpack.c.h.b16 %v371
    %v454 = vunpack.c.l.b16 %v372
    %v455 = vunpack.c.h.b16 %v372
    %v456 = vunpack.c.l.b16 %v373
    %v457 = vunpack.c.h.b16 %v373
    %v458 = vunpack.c.l.b16 %v374
    %v459 = vunpack.c.h.b16 %v374
    %v460 = vunpack.c.l.b16 %v375
    %v461 = vunpack.c.h.b16 %v375
    %v462 = vunpack.c.l.b16 %v376
    %v463 = vunpack.c.h.b16 %v376
    %v464 = vunpack.c.l.b16 %v377
    %v465 = vunpack.c.h.b16 %v377
    %v466 = vunpack.c.l.b16 %v378
    %v467 = vunpack.c.h.b16 %v378
    %v468 = vunpack.c.l.b16 %v379
    %v469 = vunpack.c.h.b16 %v379
    %v470 = vunpack.c.l.b16 %v380
    %v471 = vunpack.c.h.b16 %v380
    %v472 = vunpack.c.l.b16 %v381
    %v473 = vunpack.c.h.b16 %v381
    %v474 = vunpack.c.l.b16 %v382
    %v475 = vunpack.c.h.b16 %v382
    %v476 = vunpack.c.l.b16 %v383
    %v477 = vunpack.c.h.b16 %v383
    %v478 = vunpack.c.l.b16 %v384
    %v479 = vunpack.c.h.b16 %v384
    %v480 = vunpack.c.l.b16 %v385
    %v481 = vunpack.c.h.b16 %v385
    %v482 = vunpack.c.l.b16 %v386
    %v483 = vunpack.c.h.b16 %v386
    %v484 = vunpack.c.l.b16 %v387
    %v485 = vunpack.c.h.b16 %v387
    %v486 = vunpack.c.l.b16 %v388
    %v487 = vunpack.c.h.b16 %v388
    %v488 = vunpack.c.l.b16 %v389
    %v489 = vunpack.c.h.b16 %v389
    %v490 = vunpack.c.l.b16 %v390
    %v491 = vunpack.c.h.b16 %v390
    %v492 = vunpack.c.l.b16 %v391
    %v493 = vunpack.c.h.b16 %v391
    %v494 = vunpack.c.l.b16 %v392
    %v495 = vunpack.c.h.b16 %v392
    %v496 = vunpack.c.l.b16 %v393
    %v497 = vunpack.c.h.b16 %v393
    %v498 = vunpack.c.l.b16 %v394
    %v499 = vunpack.c.h.b16 %v394
    %v500 = vunpack.c.l.b16 %v395
    %v501 = vunpack.c.h.b16 %v395
    %v502 = vunpack.c.l.b16 %v396
    %v503 = vunpack.c.h.b16 %v396
    %v504 = vunpack.c.l.b16 %v397
    %v505 = vunpack.c.h.b16 %v397
    %v506 = vpack.c.b16 %v444, %v442
    %v507 = vpack.c.b16 %v445, %v443
    %v508 = vpack.c.b16 %v448, %v446
    %v509 = vpack.c.b16 %v449, %v447
    %v510 = vpack.c.b16 %v452, %v450
    %v511 = vpack.c.b16 %v453, %v451
    %v512 = vpack.c.b16 %v456, %v454
    %v513 = vpack.c.b16 %v457, %v455
    %v514 = vpack.c.b16 %v460, %v458
    %v515 = vpack.c.b16 %v461, %v459
    %v516 = vpack.c.b16 %v464, %v462
    %v517 = vpack.c.b16 %v465, %v463
    %v518 = vpack.c.b16 %v468, %v466
    %v519 = vpack.c.b16 %v469, %v467
    %v520 = vpack.c.b16 %v472, %v470
    %v521 = vpack.c.b16 %v473, %v471
    %v522 = vpack.c.b16 %v476, %v474
    %v523 = vpack.c.b16 %v477, %v475
    %v524 = vpack.c.b16 %v480, %v478
    %v525 = vpack.c.b16 %v481, %v479
    %v526 = vpack.c.b16 %v484, %v482
    %v527 = vpack.c.b16 %v485, %v483
    %v528 = vpack.c.b16 %v488, %v486
    %v529 = vpack.c.b16 %v489, %v487
    %v530 = vpack.c.b16 %v492, %v490
    %v531 = vpack.c.b16 %v493, %v491
    %v532 = vpack.c.b16 %v496, %v494
    %v533 = vpack.c.b16 %v497, %v495
    %v534 = vpack.c.b16 %v500, %v498
    %v535 = vpack.c.b16 %v501, %v499
    %v536 = vpack.c.b16 %v504, %v502
    %v537 = vpack.c.b16 %v505, %v503
    %570 = vmatprep.subr.bf16.mxu0 %v521
    %571 = vmatpush1.bf16.msra.mxu0 %v520
    %572 = vmatprep.subr.bf16.mxu0 %v519
    %573 = vmatpush1.bf16.msra.mxu0 %v518
    %574 = vmatprep.subr.bf16.mxu0 %v517
    %575 = vmatpush1.bf16.msra.mxu0 %v516
    %576 = vmatprep.subr.bf16.mxu0 %v515
    %577 = vmatpush1.bf16.msra.mxu0 %v514
    %578 = vmatprep.subr.bf16.mxu0 %v513
    %579 = vmatpush1.bf16.msra.mxu0 %v512
    %580 = vmatprep.subr.bf16.mxu0 %v511
    %581 = vmatpush1.bf16.msra.mxu0 %v510
    %582 = vmatprep.subr.bf16.mxu0 %v509
    %583 = vmatpush1.bf16.msra.mxu0 %v508
    %584 = vmatprep.subr.bf16.mxu0 %v507
    %585 = vmatpush1.bf16.msra.mxu0 %v506
    %586 = vmatprep.subr.bf16.mxu0 %v537
    %587 = vmatpush2.bf16.msra.mxu0 %v536
    %588 = vmatprep.subr.bf16.mxu0 %v535
    %589 = vmatpush2.bf16.msra.mxu0 %v534
    %590 = vmatprep.subr.bf16.mxu0 %v533
    %591 = vmatpush2.bf16.msra.mxu0 %v532
    %592 = vmatprep.subr.bf16.mxu0 %v531
    %593 = vmatpush2.bf16.msra.mxu0 %v530
    %594 = vmatprep.subr.bf16.mxu0 %v529
    %595 = vmatpush2.bf16.msra.mxu0 %v528
    %596 = vmatprep.subr.bf16.mxu0 %v527
    %597 = vmatpush2.bf16.msra.mxu0 %v526
    %598 = vmatprep.subr.bf16.mxu0 %v525
    %599 = vmatpush2.bf16.msra.mxu0 %v524
    %600 = vmatprep.subr.bf16.mxu0 %v523
    %601 = vmatpush2.bf16.msra.mxu0 %v522
    %602 = vmatprep.mubr.bf16.mxu0 %v365
    %603 = vmatmul.mubr.bf16.gmra.mxu0 %v364
    %v604 = vpop.f32.mrf.mxu0
    %v605 = vadd.f32 %v403, %v604
    %v606 = vpop.f32.mrf.mxu0
    %v607 = vadd.f32 %v407, %v606
    %v608 = vpop.f32.mrf.mxu0
    %v609 = vpop.f32.mrf.mxu0
    %610 = vdwg.mxu0
    %v611 = vmax.f32 %v605, 0.0
    %v612 = vmax.f32 %v607, 0.0
    %v613 = vpack.c.bf16 %v362, %v362
    %v614 = vpack.c.bf16 %v363, %v363
    %v615 = vld [vmem:[#allocation10] sm:$0xff]
    %v616 = vld [vmem:[#allocation10 + $0x8] sm:$0xff]
    %v617 = vld [vmem:[#allocation10 + $0x10] sm:$0xff]
    %v618 = vld [vmem:[#allocation10 + $0x18] sm:$0xff]
    %v619 = vld [vmem:[#allocation10 + $0x20] sm:$0xff]
    %v620 = vld [vmem:[#allocation10 + $0x28] sm:$0xff]
    %v621 = vld [vmem:[#allocation10 + $0x30] sm:$0xff]
    %v622 = vld [vmem:[#allocation10 + $0x38] sm:$0xff]
    %v623 = vld [vmem:[#allocation10 + $0x40] sm:$0xff]
    %v624 = vld [vmem:[#allocation10 + $0x48] sm:$0xff]
    %v625 = vld [vmem:[#allocation10 + $0x50] sm:$0xff]
    %v626 = vld [vmem:[#allocation10 + $0x58] sm:$0xff]
    %v627 = vld [vmem:[#allocation10 + $0x60] sm:$0xff]
    %v628 = vld [vmem:[#allocation10 + $0x68] sm:$0xff]
    %v629 = vld [vmem:[#allocation10 + $0x70] sm:$0xff]
    %v630 = vld [vmem:[#allocation10 + $0x78] sm:$0xff]
    %v631 = vld [vmem:[#allocation10 + $0x80] sm:$0xff]
    %v632 = vld [vmem:[#allocation10 + $0x88] sm:$0xff]
    %v633 = vld [vmem:[#allocation10 + $0x90] sm:$0xff]
    %v634 = vld [vmem:[#allocation10 + $0x98] sm:$0xff]
    %v635 = vld [vmem:[#allocation10 + $0xa0] sm:$0xff]
    %v636 = vld [vmem:[#allocation10 + $0xa8] sm:$0xff]
    %v637 = vld [vmem:[#allocation10 + $0xb0] sm:$0xff]
    %v638 = vld [vmem:[#allocation10 + $0xb8] sm:$0xff]
    %v639 = vld [vmem:[#allocation10 + $0xc0] sm:$0xff]
    %v640 = vld [vmem:[#allocation10 + $0xc8] sm:$0xff]
    %v641 = vld [vmem:[#allocation10 + $0xd0] sm:$0xff]
    %v642 = vld [vmem:[#allocation10 + $0xd8] sm:$0xff]
    %v643 = vld [vmem:[#allocation10 + $0xe0] sm:$0xff]
    %v644 = vld [vmem:[#allocation10 + $0xe8] sm:$0xff]
    %v645 = vld [vmem:[#allocation10 + $0xf0] sm:$0xff]
    %v646 = vld [vmem:[#allocation10 + $0xf8] sm:$0xff]
    %v647 = vld [vmem:[%s7] sm:$0x3]
    %v649 = vlaneseq
    %v650 = vshrl.u32 %v649, 7
    %v651 = vsub.s32 0, %v650
    %v652 = vrot.slane %v647, %v651
    %v653 = vlaneseq
    %v654 = vshrl.u32 %v653, 7
    %v655 = vsub.s32 1, %v654
    %v656 = vrot.slane %v647, %v655
    %v691 = vunpack.c.l.b16 %v615
    %v692 = vunpack.c.h.b16 %v615
    %v693 = vunpack.c.l.b16 %v616
    %v694 = vunpack.c.h.b16 %v616
    %v695 = vunpack.c.l.b16 %v617
    %v696 = vunpack.c.h.b16 %v617
    %v697 = vunpack.c.l.b16 %v618
    %v698 = vunpack.c.h.b16 %v618
    %v699 = vunpack.c.l.b16 %v619
    %v700 = vunpack.c.h.b16 %v619
    %v701 = vunpack.c.l.b16 %v620
    %v702 = vunpack.c.h.b16 %v620
    %v703 = vunpack.c.l.b16 %v621
    %v704 = vunpack.c.h.b16 %v621
    %v705 = vunpack.c.l.b16 %v622
    %v706 = vunpack.c.h.b16 %v622
    %v707 = vunpack.c.l.b16 %v623
    %v708 = vunpack.c.h.b16 %v623
    %v709 = vunpack.c.l.b16 %v624
    %v710 = vunpack.c.h.b16 %v624
    %v711 = vunpack.c.l.b16 %v625
    %v712 = vunpack.c.h.b16 %v625
    %v713 = vunpack.c.l.b16 %v626
    %v714 = vunpack.c.h.b16 %v626
    %v715 = vunpack.c.l.b16 %v627
    %v716 = vunpack.c.h.b16 %v627
    %v717 = vunpack.c.l.b16 %v628
    %v718 = vunpack.c.h.b16 %v628
    %v719 = vunpack.c.l.b16 %v629
    %v720 = vunpack.c.h.b16 %v629
    %v721 = vunpack.c.l.b16 %v630
    %v722 = vunpack.c.h.b16 %v630
    %v723 = vunpack.c.l.b16 %v631
    %v724 = vunpack.c.h.b16 %v631
    %v725 = vunpack.c.l.b16 %v632
    %v726 = vunpack.c.h.b16 %v632
    %v727 = vunpack.c.l.b16 %v633
    %v728 = vunpack.c.h.b16 %v633
    %v729 = vunpack.c.l.b16 %v634
    %v730 = vunpack.c.h.b16 %v634
    %v731 = vunpack.c.l.b16 %v635
    %v732 = vunpack.c.h.b16 %v635
    %v733 = vunpack.c.l.b16 %v636
    %v734 = vunpack.c.h.b16 %v636
    %v735 = vunpack.c.l.b16 %v637
    %v736 = vunpack.c.h.b16 %v637
    %v737 = vunpack.c.l.b16 %v638
    %v738 = vunpack.c.h.b16 %v638
    %v739 = vunpack.c.l.b16 %v639
    %v740 = vunpack.c.h.b16 %v639
    %v741 = vunpack.c.l.b16 %v640
    %v742 = vunpack.c.h.b16 %v640
    %v743 = vunpack.c.l.b16 %v641
    %v744 = vunpack.c.h.b16 %v641
    %v745 = vunpack.c.l.b16 %v642
    %v746 = vunpack.c.h.b16 %v642
    %v747 = vunpack.c.l.b16 %v643
    %v748 = vunpack.c.h.b16 %v643
    %v749 = vunpack.c.l.b16 %v644
    %v750 = vunpack.c.h.b16 %v644
    %v751 = vunpack.c.l.b16 %v645
    %v752 = vunpack.c.h.b16 %v645
    %v753 = vunpack.c.l.b16 %v646
    %v754 = vunpack.c.h.b16 %v646
    %v755 = vpack.c.b16 %v693, %v691
    %v756 = vpack.c.b16 %v694, %v692
    %v757 = vpack.c.b16 %v697, %v695
    %v758 = vpack.c.b16 %v698, %v696
    %v759 = vpack.c.b16 %v701, %v699
    %v760 = vpack.c.b16 %v702, %v700
    %v761 = vpack.c.b16 %v705, %v703
    %v762 = vpack.c.b16 %v706, %v704
    %v763 = vpack.c.b16 %v709, %v707
    %v764 = vpack.c.b16 %v710, %v708
    %v765 = vpack.c.b16 %v713, %v711
    %v766 = vpack.c.b16 %v714, %v712
    %v767 = vpack.c.b16 %v717, %v715
    %v768 = vpack.c.b16 %v718, %v716
    %v769 = vpack.c.b16 %v721, %v719
    %v770 = vpack.c.b16 %v722, %v720
    %v771 = vpack.c.b16 %v725, %v723
    %v772 = vpack.c.b16 %v726, %v724
    %v773 = vpack.c.b16 %v729, %v727
    %v774 = vpack.c.b16 %v730, %v728
    %v775 = vpack.c.b16 %v733, %v731
    %v776 = vpack.c.b16 %v734, %v732
    %v777 = vpack.c.b16 %v737, %v735
    %v778 = vpack.c.b16 %v738, %v736
    %v779 = vpack.c.b16 %v741, %v739
    %v780 = vpack.c.b16 %v742, %v740
    %v781 = vpack.c.b16 %v745, %v743
    %v782 = vpack.c.b16 %v746, %v744
    %v783 = vpack.c.b16 %v749, %v747
    %v784 = vpack.c.b16 %v750, %v748
    %v785 = vpack.c.b16 %v753, %v751
    %v786 = vpack.c.b16 %v754, %v752
    %819 = vmatprep.subr.bf16.mxu0 %v770
    %820 = vmatpush1.bf16.msra.mxu0 %v769
    %821 = vmatprep.subr.bf16.mxu0 %v768
    %822 = vmatpush1.bf16.msra.mxu0 %v767
    %823 = vmatprep.subr.bf16.mxu0 %v766
    %824 = vmatpush1.bf16.msra.mxu0 %v765
    %825 = vmatprep.subr.bf16.mxu0 %v764
    %826 = vmatpush1.bf16.msra.mxu0 %v763
    %827 = vmatprep.subr.bf16.mxu0 %v762
    %828 = vmatpush1.bf16.msra.mxu0 %v761
    %829 = vmatprep.subr.bf16.mxu0 %v760
    %830 = vmatpush1.bf16.msra.mxu0 %v759
    %831 = vmatprep.subr.bf16.mxu0 %v758
    %832 = vmatpush1.bf16.msra.mxu0 %v757
    %833 = vmatprep.subr.bf16.mxu0 %v756
    %834 = vmatpush1.bf16.msra.mxu0 %v755
    %835 = vmatprep.subr.bf16.mxu0 %v786
    %836 = vmatpush2.bf16.msra.mxu0 %v785
    %837 = vmatprep.subr.bf16.mxu0 %v784
    %838 = vmatpush2.bf16.msra.mxu0 %v783
    %839 = vmatprep.subr.bf16.mxu0 %v782
    %840 = vmatpush2.bf16.msra.mxu0 %v781
    %841 = vmatprep.subr.bf16.mxu0 %v780
    %842 = vmatpush2.bf16.msra.mxu0 %v779
    %843 = vmatprep.subr.bf16.mxu0 %v778
    %844 = vmatpush2.bf16.msra.mxu0 %v777
    %845 = vmatprep.subr.bf16.mxu0 %v776
    %846 = vmatpush2.bf16.msra.mxu0 %v775
    %847 = vmatprep.subr.bf16.mxu0 %v774
    %848 = vmatpush2.bf16.msra.mxu0 %v773
    %849 = vmatprep.subr.bf16.mxu0 %v772
    %850 = vmatpush2.bf16.msra.mxu0 %v771
    %851 = vmatprep.mubr.bf16.mxu0 %v614
    %852 = vmatmul.mubr.bf16.gmra.mxu0 %v613
    %v853 = vpop.f32.mrf.mxu0
    %v854 = vadd.f32 %v652, %v853
    %v855 = vpop.f32.mrf.mxu0
    %v856 = vadd.f32 %v656, %v855
    %v857 = vpop.f32.mrf.mxu0
    %v858 = vpop.f32.mrf.mxu0
    %859 = vdwg.mxu0
    %v860 = vmax.f32 %v854, 0.0
    %v861 = vmax.f32 %v856, 0.0
    %v862 = vpack.c.bf16 %v611, %v611
    %v863 = vpack.c.bf16 %v612, %v612
    %v864 = vpack.c.bf16 %v860, %v860
    %v865 = vpack.c.bf16 %v861, %v861
    %v866 = vld [vmem:[#allocation11] sm:$0xf]
    %v867 = vld [vmem:[#allocation11 + $0x4] sm:$0xf]
    %v868 = vld [vmem:[#allocation11 + $0x8] sm:$0xf]
    %v869 = vld [vmem:[#allocation11 + $0xc] sm:$0xf]
    %v870 = vld [vmem:[#allocation11 + $0x10] sm:$0xf]
    %v871 = vld [vmem:[#allocation11 + $0x14] sm:$0xf]
    %v872 = vld [vmem:[#allocation11 + $0x18] sm:$0xf]
    %v873 = vld [vmem:[#allocation11 + $0x1c] sm:$0xf]
    %v874 = vld [vmem:[#allocation11 + $0x20] sm:$0xf]
    %v875 = vld [vmem:[#allocation11 + $0x24] sm:$0xf]
    %v876 = vld [vmem:[#allocation11 + $0x28] sm:$0xf]
    %v877 = vld [vmem:[#allocation11 + $0x2c] sm:$0xf]
    %v878 = vld [vmem:[#allocation11 + $0x30] sm:$0xf]
    %v879 = vld [vmem:[#allocation11 + $0x34] sm:$0xf]
    %v880 = vld [vmem:[#allocation11 + $0x38] sm:$0xf]
    %v881 = vld [vmem:[#allocation11 + $0x3c] sm:$0xf]
    %v882 = vld [vmem:[#allocation11 + $0x40] sm:$0xf]
    %v883 = vld [vmem:[#allocation11 + $0x44] sm:$0xf]
    %v884 = vld [vmem:[#allocation11 + $0x48] sm:$0xf]
    %v885 = vld [vmem:[#allocation11 + $0x4c] sm:$0xf]
    %v886 = vld [vmem:[#allocation11 + $0x50] sm:$0xf]
    %v887 = vld [vmem:[#allocation11 + $0x54] sm:$0xf]
    %v888 = vld [vmem:[#allocation11 + $0x58] sm:$0xf]
    %v889 = vld [vmem:[#allocation11 + $0x5c] sm:$0xf]
    %v890 = vld [vmem:[#allocation11 + $0x60] sm:$0xf]
    %v891 = vld [vmem:[#allocation11 + $0x64] sm:$0xf]
    %v892 = vld [vmem:[#allocation11 + $0x68] sm:$0xf]
    %v893 = vld [vmem:[#allocation11 + $0x6c] sm:$0xf]
    %v894 = vld [vmem:[#allocation11 + $0x70] sm:$0xf]
    %v895 = vld [vmem:[#allocation11 + $0x74] sm:$0xf]
    %v896 = vld [vmem:[#allocation11 + $0x78] sm:$0xf]
    %v897 = vld [vmem:[#allocation11 + $0x7c] sm:$0xf]
    %v898 = vld [vmem:[#allocation11 + $0x80] sm:$0xf]
    %v899 = vld [vmem:[#allocation11 + $0x84] sm:$0xf]
    %v900 = vld [vmem:[#allocation11 + $0x88] sm:$0xf]
    %v901 = vld [vmem:[#allocation11 + $0x8c] sm:$0xf]
    %v902 = vld [vmem:[#allocation11 + $0x90] sm:$0xf]
    %v903 = vld [vmem:[#allocation11 + $0x94] sm:$0xf]
    %v904 = vld [vmem:[#allocation11 + $0x98] sm:$0xf]
    %v905 = vld [vmem:[#allocation11 + $0x9c] sm:$0xf]
    %v906 = vld [vmem:[#allocation11 + $0xa0] sm:$0xf]
    %v907 = vld [vmem:[#allocation11 + $0xa4] sm:$0xf]
    %v908 = vld [vmem:[#allocation11 + $0xa8] sm:$0xf]
    %v909 = vld [vmem:[#allocation11 + $0xac] sm:$0xf]
    %v910 = vld [vmem:[#allocation11 + $0xb0] sm:$0xf]
    %v911 = vld [vmem:[#allocation11 + $0xb4] sm:$0xf]
    %v912 = vld [vmem:[#allocation11 + $0xb8] sm:$0xf]
    %v913 = vld [vmem:[#allocation11 + $0xbc] sm:$0xf]
    %v914 = vld [vmem:[#allocation11 + $0xc0] sm:$0xf]
    %v915 = vld [vmem:[#allocation11 + $0xc4] sm:$0xf]
    %v916 = vld [vmem:[#allocation11 + $0xc8] sm:$0xf]
    %v917 = vld [vmem:[#allocation11 + $0xcc] sm:$0xf]
    %v918 = vld [vmem:[#allocation11 + $0xd0] sm:$0xf]
    %v919 = vld [vmem:[#allocation11 + $0xd4] sm:$0xf]
    %v920 = vld [vmem:[#allocation11 + $0xd8] sm:$0xf]
    %v921 = vld [vmem:[#allocation11 + $0xdc] sm:$0xf]
    %v922 = vld [vmem:[#allocation11 + $0xe0] sm:$0xf]
    %v923 = vld [vmem:[#allocation11 + $0xe4] sm:$0xf]
    %v924 = vld [vmem:[#allocation11 + $0xe8] sm:$0xf]
    %v925 = vld [vmem:[#allocation11 + $0xec] sm:$0xf]
    %v926 = vld [vmem:[#allocation11 + $0xf0] sm:$0xf]
    %v927 = vld [vmem:[#allocation11 + $0xf4] sm:$0xf]
    %v928 = vld [vmem:[#allocation11 + $0xf8] sm:$0xf]
    %v929 = vld [vmem:[#allocation11 + $0xfc] sm:$0xf]
    %v930 = vld [vmem:[%s9] sm:$0x1]
    %v932 = vlaneseq
    %v933 = vshrl.u32 %v932, 7
    %v934 = vsub.s32 0, %v933
    %v935 = vrot.slane %v930, %v934
    %v1001 = vunpack.c.l.b16 %v866
    %v1002 = vunpack.c.l.b16 %v867
    %v1003 = vunpack.c.l.b16 %v868
    %v1004 = vunpack.c.l.b16 %v869
    %v1005 = vunpack.c.l.b16 %v870
    %v1006 = vunpack.c.l.b16 %v871
    %v1007 = vunpack.c.l.b16 %v872
    %v1008 = vunpack.c.l.b16 %v873
    %v1009 = vunpack.c.l.b16 %v874
    %v1010 = vunpack.c.l.b16 %v875
    %v1011 = vunpack.c.l.b16 %v876
    %v1012 = vunpack.c.l.b16 %v877
    %v1013 = vunpack.c.l.b16 %v878
    %v1014 = vunpack.c.l.b16 %v879
    %v1015 = vunpack.c.l.b16 %v880
    %v1016 = vunpack.c.l.b16 %v881
    %v1017 = vunpack.c.l.b16 %v882
    %v1018 = vunpack.c.l.b16 %v883
    %v1019 = vunpack.c.l.b16 %v884
    %v1020 = vunpack.c.l.b16 %v885
    %v1021 = vunpack.c.l.b16 %v886
    %v1022 = vunpack.c.l.b16 %v887
    %v1023 = vunpack.c.l.b16 %v888
    %v1024 = vunpack.c.l.b16 %v889
    %v1025 = vunpack.c.l.b16 %v890
    %v1026 = vunpack.c.l.b16 %v891
    %v1027 = vunpack.c.l.b16 %v892
    %v1028 = vunpack.c.l.b16 %v893
    %v1029 = vunpack.c.l.b16 %v894
    %v1030 = vunpack.c.l.b16 %v895
    %v1031 = vunpack.c.l.b16 %v896
    %v1032 = vunpack.c.l.b16 %v897
    %v1033 = vunpack.c.l.b16 %v898
    %v1034 = vunpack.c.l.b16 %v899
    %v1035 = vunpack.c.l.b16 %v900
    %v1036 = vunpack.c.l.b16 %v901
    %v1037 = vunpack.c.l.b16 %v902
    %v1038 = vunpack.c.l.b16 %v903
    %v1039 = vunpack.c.l.b16 %v904
    %v1040 = vunpack.c.l.b16 %v905
    %v1041 = vunpack.c.l.b16 %v906
    %v1042 = vunpack.c.l.b16 %v907
    %v1043 = vunpack.c.l.b16 %v908
    %v1044 = vunpack.c.l.b16 %v909
    %v1045 = vunpack.c.l.b16 %v910
    %v1046 = vunpack.c.l.b16 %v911
    %v1047 = vunpack.c.l.b16 %v912
    %v1048 = vunpack.c.l.b16 %v913
    %v1049 = vunpack.c.l.b16 %v914
    %v1050 = vunpack.c.l.b16 %v915
    %v1051 = vunpack.c.l.b16 %v916
    %v1052 = vunpack.c.l.b16 %v917
    %v1053 = vunpack.c.l.b16 %v918
    %v1054 = vunpack.c.l.b16 %v919
    %v1055 = vunpack.c.l.b16 %v920
    %v1056 = vunpack.c.l.b16 %v921
    %v1057 = vunpack.c.l.b16 %v922
    %v1058 = vunpack.c.l.b16 %v923
    %v1059 = vunpack.c.l.b16 %v924
    %v1060 = vunpack.c.l.b16 %v925
    %v1061 = vunpack.c.l.b16 %v926
    %v1062 = vunpack.c.l.b16 %v927
    %v1063 = vunpack.c.l.b16 %v928
    %v1064 = vunpack.c.l.b16 %v929
    %v1065 = vpack.c.b16 %v1002, %v1001
    %v1066 = vpack.c.b16 %v1004, %v1003
    %v1067 = vpack.c.b16 %v1006, %v1005
    %v1068 = vpack.c.b16 %v1008, %v1007
    %v1069 = vpack.c.b16 %v1010, %v1009
    %v1070 = vpack.c.b16 %v1012, %v1011
    %v1071 = vpack.c.b16 %v1014, %v1013
    %v1072 = vpack.c.b16 %v1016, %v1015
    %v1073 = vpack.c.b16 %v1018, %v1017
    %v1074 = vpack.c.b16 %v1020, %v1019
    %v1075 = vpack.c.b16 %v1022, %v1021
    %v1076 = vpack.c.b16 %v1024, %v1023
    %v1077 = vpack.c.b16 %v1026, %v1025
    %v1078 = vpack.c.b16 %v1028, %v1027
    %v1079 = vpack.c.b16 %v1030, %v1029
    %v1080 = vpack.c.b16 %v1032, %v1031
    %v1081 = vpack.c.b16 %v1034, %v1033
    %v1082 = vpack.c.b16 %v1036, %v1035
    %v1083 = vpack.c.b16 %v1038, %v1037
    %v1084 = vpack.c.b16 %v1040, %v1039
    %v1085 = vpack.c.b16 %v1042, %v1041
    %v1086 = vpack.c.b16 %v1044, %v1043
    %v1087 = vpack.c.b16 %v1046, %v1045
    %v1088 = vpack.c.b16 %v1048, %v1047
    %v1089 = vpack.c.b16 %v1050, %v1049
    %v1090 = vpack.c.b16 %v1052, %v1051
    %v1091 = vpack.c.b16 %v1054, %v1053
    %v1092 = vpack.c.b16 %v1056, %v1055
    %v1093 = vpack.c.b16 %v1058, %v1057
    %v1094 = vpack.c.b16 %v1060, %v1059
    %v1095 = vpack.c.b16 %v1062, %v1061
    %v1096 = vpack.c.b16 %v1064, %v1063
    %1129 = vmatprep.subr.bf16.mxu0 0
    %1130 = vmatpush1.bf16.msra.mxu0 %v1072
    %1131 = vmatprep.subr.bf16.mxu0 0
    %1132 = vmatpush1.bf16.msra.mxu0 %v1071
    %1133 = vmatprep.subr.bf16.mxu0 0
    %1134 = vmatpush1.bf16.msra.mxu0 %v1070
    %1135 = vmatprep.subr.bf16.mxu0 0
    %1136 = vmatpush1.bf16.msra.mxu0 %v1069
    %1137 = vmatprep.subr.bf16.mxu0 0
    %1138 = vmatpush1.bf16.msra.mxu0 %v1068
    %1139 = vmatprep.subr.bf16.mxu0 0
    %1140 = vmatpush1.bf16.msra.mxu0 %v1067
    %1141 = vmatprep.subr.bf16.mxu0 0
    %1142 = vmatpush1.bf16.msra.mxu0 %v1066
    %1143 = vmatprep.subr.bf16.mxu0 0
    %1144 = vmatpush1.bf16.msra.mxu0 %v1065
    %1145 = vmatprep.subr.bf16.mxu0 0
    %1146 = vmatpush2.bf16.msra.mxu0 %v1080
    %1147 = vmatprep.subr.bf16.mxu0 0
    %1148 = vmatpush2.bf16.msra.mxu0 %v1079
    %1149 = vmatprep.subr.bf16.mxu0 0
    %1150 = vmatpush2.bf16.msra.mxu0 %v1078
    %1151 = vmatprep.subr.bf16.mxu0 0
    %1152 = vmatpush2.bf16.msra.mxu0 %v1077
    %1153 = vmatprep.subr.bf16.mxu0 0
    %1154 = vmatpush2.bf16.msra.mxu0 %v1076
    %1155 = vmatprep.subr.bf16.mxu0 0
    %1156 = vmatpush2.bf16.msra.mxu0 %v1075
    %1157 = vmatprep.subr.bf16.mxu0 0
    %1158 = vmatpush2.bf16.msra.mxu0 %v1074
    %1159 = vmatprep.subr.bf16.mxu0 0
    %1160 = vmatpush2.bf16.msra.mxu0 %v1073
    %1161 = vmatprep.mubr.bf16.mxu0 %v863
    %1162 = vmatmul.mubr.bf16.gmra.mxu0 %v862
    %v1163 = vpop.f32.mrf.mxu0
    %v1164 = vadd.f32 %v935, %v1163
    %v1165 = vpop.f32.mrf.mxu0
    %v1166 = vpop.f32.mrf.mxu0
    %v1167 = vpop.f32.mrf.mxu0
    %1168 = vdwg.mxu0
    %1169 = vmatprep.subr.bf16.mxu0 0
    %1170 = vmatpush1.bf16.msra.mxu0 %v1088
    %1171 = vmatprep.subr.bf16.mxu0 0
    %1172 = vmatpush1.bf16.msra.mxu0 %v1087
    %1173 = vmatprep.subr.bf16.mxu0 0
    %1174 = vmatpush1.bf16.msra.mxu0 %v1086
    %1175 = vmatprep.subr.bf16.mxu0 0
    %1176 = vmatpush1.bf16.msra.mxu0 %v1085
    %1177 = vmatprep.subr.bf16.mxu0 0
    %1178 = vmatpush1.bf16.msra.mxu0 %v1084
    %1179 = vmatprep.subr.bf16.mxu0 0
    %1180 = vmatpush1.bf16.msra.mxu0 %v1083
    %1181 = vmatprep.subr.bf16.mxu0 0
    %1182 = vmatpush1.bf16.msra.mxu0 %v1082
    %1183 = vmatprep.subr.bf16.mxu0 0
    %1184 = vmatpush1.bf16.msra.mxu0 %v1081
    %1185 = vmatprep.subr.bf16.mxu0 0
    %1186 = vmatpush2.bf16.msra.mxu0 %v1096
    %1187 = vmatprep.subr.bf16.mxu0 0
    %1188 = vmatpush2.bf16.msra.mxu0 %v1095
    %1189 = vmatprep.subr.bf16.mxu0 0
    %1190 = vmatpush2.bf16.msra.mxu0 %v1094
    %1191 = vmatprep.subr.bf16.mxu0 0
    %1192 = vmatpush2.bf16.msra.mxu0 %v1093
    %1193 = vmatprep.subr.bf16.mxu0 0
    %1194 = vmatpush2.bf16.msra.mxu0 %v1092
    %1195 = vmatprep.subr.bf16.mxu0 0
    %1196 = vmatpush2.bf16.msra.mxu0 %v1091
    %1197 = vmatprep.subr.bf16.mxu0 0
    %1198 = vmatpush2.bf16.msra.mxu0 %v1090
    %1199 = vmatprep.subr.bf16.mxu0 0
    %1200 = vmatpush2.bf16.msra.mxu0 %v1089
    %1201 = vmatprep.mubr.bf16.mxu0 %v865
    %1202 = vmatmul.mubr.bf16.gmra.mxu0 %v864
    %v1203 = vpop.f32.mrf.mxu0
    %v1204 = vadd.f32 %v1164, %v1203
    %v1205 = vpop.f32.mrf.mxu0
    %v1206 = vpop.f32.mrf.mxu0
    %v1207 = vpop.f32.mrf.mxu0
    %1208 = vdwg.mxu0
    %v1209 = vlaneseq
    %v1210 = vand.u32 %v1209, 127
    %vm1211 = vcmp.lt.s32.totalorder %v1210, 4
    %v1212 = vtanh.pop %v1204
    %v1213 = vmul.f32 %v1212, 3.0
    %vm1214 = vcmp.lt.s32.totalorder %v1210, 8
    %v1215 = vmin.f32 %v1204, 20.0
    %vm1216 = vcmp.gt.f32.partialorder %v1204, 20.0
    %v1217 = vmul.f32 %v1215, 1.442695
    %v1218 = vpow.pop %v1217
    %v1219 = vadd.f32 %v1218, 1.0
    %v1220 = vlog2.pop %v1219
    %v1221 = vmul.f32 %v1220, 0.6931472
    %v1222 = vmul.f32 -0.5, %v1218
    %v1223 = vadd.f32 %v1222, 1.0
    %v1224 = vmul.f32 %v1223, %v1218
    %v1225 = vand.u32 2147483647, %v1218
    %vm1226 = vcmp.lt.f32.partialorder %v1225, 0.0004427343
    %v1227 = vsel %vm1226, %v1224, %v1221
    %v1228 = vsel %vm1216, %v1204, %v1227
    %v1229 = vsel %vm1214, %v1228, %v1204
    %v1230 = vsel %vm1211, %v1213, %v1229
    %1231 = vst [vmem:[#allocation13] sm:$0xff] %v1230
    // Predicated region
    $region66: #{tpu_custom_call.1} parent=1 // pred_check
      _
    $region67: #{tpu_custom_call.1} parent=1 // pred_check_branch
      %1233 = sbr.rel (0) target = $region69
    $region68: #{tpu_custom_call.1} parent=1 // pred_region
      %s1235 = ssub.s32 128, 128
      %1236 = vsyncadd [#allocation4], %s1235
      %s1238 = sshll.u32 [#allocation13], 4
      %s1239 = int_to_ptr.vmem [resolvable:$true] %s1238
      %1241 = dma.vmem_to_hbm [thread:$0]  %s1239, 128, %s10, [#allocation4]
    $region69: #{tpu_custom_call.1} parent=1 // pred_fallthru
      _
    // Predicated region
    $region70: #{tpu_custom_call.1} parent=1 // pred_check
      _
    $region71: #{tpu_custom_call.1} parent=1 // pred_check_branch
      %1243 = sbr.rel (0) target = $region73
    $region72: #{tpu_custom_call.1} parent=1 // pred_region
      %1244 = dma.done [#allocation4], 128
    $region73: #{tpu_custom_call.1} parent=1 // pred_fallthru
      _
    %1245 = vsyncpa [#allocation3], 1
    %1246 = vsyncpa [#allocation6], 1
    %1247 = vsyncpa [#allocation9], 1
    %1248 = vsyncpa [#allocation12], 1
    %1249 = vsyncpa [#allocation4], 1

</llo_original>
